<compile_context>
chip_gen: v6e
topology: v6e:2x2x1
jax: 0.10.0
libtpu: 0.0.40
codegen_flags: <defaults>
</compile_context>

<pallas_src>
import functools

import jax
import jax.numpy as jnp
from jax.experimental import pallas as pl
from jax.experimental.pallas import tpu as pltpu

_LANE = 128
_SUBLANE = 8
_MAX_TM = 2048  # rows per block: 2048*128*4B = 1 MiB per logits buffer (x2 double-buffer)


def _round_up(x, m):
    return ((x + m - 1) // m) * m


# ---------------------------------------------------------------------------
# Kernels
# ---------------------------------------------------------------------------
def _bigram_loss_kernel(idx_ref, tgt_ref, table_ref, lse_ref,
                        logits_ref, per_row_ref, *, n_rows):
    pid = pl.program_id(0)
    tm, v_pad = logits_ref.shape

    ids = idx_ref[...]                                            # (TM, 1) int32
    tgt = tgt_ref[...]                                            # (TM, 1) int32
    col = jax.lax.broadcasted_iota(jnp.int32, (tm, v_pad), 1)     # (TM, Vpad)

    # Embedding gather realized as one-hot @ table on the MXU (exact for one-hot rows).
    onehot = (col == ids).astype(jnp.float32)                     # (TM, Vpad)
    logits = jnp.dot(onehot, table_ref[...],
                     preferred_element_type=jnp.float32)          # (TM, Vpad)
    logits_ref[...] = logits                                      # lane-dense 128-wide store

    # Target logit: masked lane-reduce (no second one-hot materialization).
    tgt_logit = jnp.sum(jnp.where(col == tgt, logits, 0.0),
                        axis=-1, keepdims=True)                   # (TM, 1)

    # Per-token logsumexp gathered from the precomputed per-vocab-row LSE table:
    # no per-token exp/log or cross-lane max/sum in the kernel.
    lse = jnp.sum(jnp.where(col == ids, lse_ref[...], 0.0),
                  axis=-1, keepdims=True)                         # (TM, 1)

    per_row = lse - tgt_logit                                     # (TM, 1)

    # Zero rows that exist only because N was padded up to a multiple of TM.
    row = pid * tm + jax.lax.broadcasted_iota(jnp.int32, (tm, 1), 0)
    per_row_ref[...] = jnp.where(row < n_rows, per_row, 0.0)


def _bigram_logits_kernel(idx_ref, table_ref, logits_ref):
    # Inference path: embedding lookup only, no cross-entropy work.
    tm, v_pad = logits_ref.shape
    ids = idx_ref[...]                                            # (TM, 1) int32
    col = jax.lax.broadcasted_iota(jnp.int32, (tm, v_pad), 1)
    onehot = (col == ids).astype(jnp.float32)
    logits_ref[...] = jnp.dot(onehot, table_ref[...],
                              preferred_element_type=jnp.float32)


# ---------------------------------------------------------------------------
# pallas_call wrappers
# ---------------------------------------------------------------------------
def _pad_inputs(idx_flat, table, vocab):
    n = idx_flat.shape[0]
    v_pad = _round_up(vocab, _LANE)
    tm = min(_MAX_TM, _round_up(n, _SUBLANE))
    n_pad = _round_up(n, tm)
    idx_p = jnp.pad(idx_flat.reshape(n, 1), ((0, n_pad - n), (0, 0)))
    table_p = jnp.pad(table, ((0, v_pad - vocab), (0, v_pad - vocab)))
    return idx_p, table_p, n, n_pad, tm, v_pad


@functools.partial(jax.jit, static_argnames=("vocab",))
def _bigram_pallas_loss(idx_flat, tgt_flat, table, *, vocab):
    idx_p, table_p, n, n_pad, tm, v_pad = _pad_inputs(idx_flat, table, vocab)
    tgt_p = jnp.pad(tgt_flat.reshape(n, 1), ((0, n_pad - n), (0, 0)))
    num_blocks = n_pad // tm

    # Tiny O(V^2) pre-pass (V=65): per-vocab-row logsumexp of the embedding table.
    # Each logits row equals a table row, so this is exactly the per-token LSE.
    row_lse = jax.scipy.special.logsumexp(table, axis=-1).reshape(1, vocab)
    row_lse_p = jnp.pad(row_lse, ((0, 0), (0, v_pad - vocab)))

    kernel = functools.partial(_bigram_loss_kernel, n_rows=n)
    logits_p, per_row = pl.pallas_call(
        kernel,
        out_shape=(
            jax.ShapeDtypeStruct((n_pad, v_pad), jnp.float32),
            jax.ShapeDtypeStruct((n_pad, 1), jnp.float32),
        ),
        grid_spec=pltpu.PrefetchScalarGridSpec(
            num_scalar_prefetch=0,
            grid=(num_blocks,),
            in_specs=[
                pl.BlockSpec((tm, 1), lambda i: (i, 0)),
                pl.BlockSpec((tm, 1), lambda i: (i, 0)),
                pl.BlockSpec((v_pad, v_pad), lambda i: (0, 0)),   # table resident
                pl.BlockSpec((1, v_pad), lambda i: (0, 0)),       # row-LSE resident
            ],
            out_specs=(
                pl.BlockSpec((tm, v_pad), lambda i: (i, 0)),      # lane-dense logits tiles
                pl.BlockSpec((tm, 1), lambda i: (i, 0)),          # per-row loss tiles
            ),
        ),
        compiler_params=pltpu.CompilerParams(
            dimension_semantics=("parallel",),                    # no shared accumulator
            vmem_limit_bytes=32 * 1024 * 1024,                    # portable v5e/v6e/v7x
        ),
    )(idx_p, tgt_p, table_p, row_lse_p)

    # Single mean at the end (padded rows already zeroed in-kernel): no per-block
    # accumulation-order drift, and the row grid stays fully parallel.
    loss = jnp.sum(per_row) / n
    return logits_p[:n, :vocab], loss


@functools.partial(jax.jit, static_argnames=("vocab",))
def _bigram_pallas_logits(idx_flat, table, *, vocab):
    idx_p, table_p, n, n_pad, tm, v_pad = _pad_inputs(idx_flat, table, vocab)
    num_blocks = n_pad // tm

    logits_p = pl.pallas_call(
        _bigram_logits_kernel,
        out_shape=jax.ShapeDtypeStruct((n_pad, v_pad), jnp.float32),
        grid_spec=pltpu.PrefetchScalarGridSpec(
            num_scalar_prefetch=0,
            grid=(num_blocks,),
            in_specs=[
                pl.BlockSpec((tm, 1), lambda i: (i, 0)),
                pl.BlockSpec((v_pad, v_pad), lambda i: (0, 0)),
            ],
            out_specs=pl.BlockSpec((tm, v_pad), lambda i: (i, 0)),
        ),
        compiler_params=pltpu.CompilerParams(
            dimension_semantics=("parallel",),                    # rows independent -> megacore
            vmem_limit_bytes=32 * 1024 * 1024,
        ),
    )(idx_p, table_p)
    return logits_p[:n, :vocab]


# ---------------------------------------------------------------------------
# Model
# ---------------------------------------------------------------------------
class BigramLanguageModel:
    """JAX/Pallas port of the PyTorch BigramLanguageModel forward pass."""

    def __init__(self, vocab_size, key):
        self.vocab_size = vocab_size
        # nn.Embedding default init: N(0, 1).
        self.token_embedding_table = jax.random.normal(
            key, (vocab_size, vocab_size), dtype=jnp.float32
        )

    def forward(self, idx, targets=None):
        B, T = idx.shape
        idx_flat = idx.reshape(B * T).astype(jnp.int32)
        if targets is None:
            logits = _bigram_pallas_logits(
                idx_flat, self.token_embedding_table, vocab=self.vocab_size
            )
            return logits.reshape(B, T, self.vocab_size), None
        tgt_flat = targets.reshape(B * T).astype(jnp.int32)
        logits, loss = _bigram_pallas_loss(
            idx_flat, tgt_flat, self.token_embedding_table, vocab=self.vocab_size
        )
        return logits, loss


if __name__ == "__main__":
    B, T, V = 2, 8, 65  # small shapes; V mimics a char-level vocabulary

    key = jax.random.PRNGKey(0)
    k_tab, k_idx, k_tgt = jax.random.split(key, 3)

    model = BigramLanguageModel(V, k_tab)
    idx = jax.random.randint(k_idx, (B, T), 0, V, dtype=jnp.int32)
    targets = jax.random.randint(k_tgt, (B, T), 0, V, dtype=jnp.int32)

    logits, loss = model.forward(idx, targets)
    logits = jax.block_until_ready(logits)
    loss = jax.block_until_ready(loss)

    # Pure-JAX reference check (embedding gather + mean cross-entropy).
    ref_logits = model.token_embedding_table[idx.reshape(-1)]
    ref_lse = jax.scipy.special.logsumexp(ref_logits, axis=-1)
    ref_loss = jnp.mean(
        ref_lse - ref_logits[jnp.arange(B * T), targets.reshape(-1)]
    )
    assert logits.shape == (B * T, V)
    assert jnp.allclose(logits, ref_logits, atol=1e-5)
    assert jnp.allclose(loss, ref_loss, atol=1e-5)

    # targets=None path: logits shaped (B, T, V), loss is None, no CE work done.
    logits_nt, loss_nt = model.forward(idx)
    logits_nt = jax.block_until_ready(logits_nt)
    assert logits_nt.shape == (B, T, V) and loss_nt is None
    assert jnp.allclose(logits_nt.reshape(B * T, V), ref_logits, atol=1e-5)

    print("KERNEL_OK")
</pallas_src>

<mosaic_0001>
module attributes {stable_mosaic.version = 11 : i64} {
  func.func @_bigram_loss_kernel(%arg0: i32, %arg1: memref<16x1xi32, #tpu.memory_space<vmem>>, %arg2: memref<16x1xi32, #tpu.memory_space<vmem>>, %arg3: memref<128x128xf32, #tpu.memory_space<vmem>>, %arg4: memref<1x128xf32, #tpu.memory_space<vmem>>, %arg5: memref<16x128xf32, #tpu.memory_space<vmem>>, %arg6: memref<16x1xf32, #tpu.memory_space<vmem>>) attributes {dimension_semantics = [#tpu.dimension_semantics<parallel>], iteration_bounds = array<i64: 1>, scalar_prefetch = 0 : i64, scratch_operands = 0 : i64, tpu.core_type = #tpu.core_type<tc>, window_params = [{transform_indices = @transform_0, window_bounds = array<i64: 16, 1>}, {transform_indices = @transform_1, window_bounds = array<i64: 16, 1>}, {pipeline_mode = #tpu.pipeline_mode<synchronous>, transform_indices = @transform_2, window_bounds = array<i64: 128, 128>}, {pipeline_mode = #tpu.pipeline_mode<synchronous>, transform_indices = @transform_3, window_bounds = array<i64: 1, 128>}, {transform_indices = @transform_4, window_bounds = array<i64: 16, 128>}, {transform_indices = @transform_5, window_bounds = array<i64: 16, 1>}]} {
    %c0 = arith.constant 0 : index
    %c0_0 = arith.constant 0 : index
    %0 = vector.load %arg1[%c0, %c0_0] : memref<16x1xi32, #tpu.memory_space<vmem>>, vector<16x1xi32>
    %c0_1 = arith.constant 0 : index
    %c0_2 = arith.constant 0 : index
    %1 = vector.load %arg2[%c0_1, %c0_2] : memref<16x1xi32, #tpu.memory_space<vmem>>, vector<16x1xi32>
    %2 = tpu.iota {dimensions = array<i32: 1>} : vector<16x128xi32>
    %3 = vector.broadcast %0 : vector<16x1xi32> to vector<16x128xi32>
    %4 = arith.cmpi eq, %2, %3 : vector<16x128xi32>
    %5 = arith.extui %4 : vector<16x128xi1> to vector<16x128xi32>
    %6 = arith.sitofp %5 : vector<16x128xi32> to vector<16x128xf32>
    %c0_3 = arith.constant 0 : index
    %c0_4 = arith.constant 0 : index
    %7 = vector.load %arg3[%c0_3, %c0_4] : memref<128x128xf32, #tpu.memory_space<vmem>>, vector<128x128xf32>
    %cst = arith.constant dense<0.000000e+00> : vector<16x128xf32>
    %8 = tpu.matmul %6, %7, %cst {dimension_numbers = #tpu.dot_dimension_numbers<[1], [0], [0], [1], [0, 0, 1, 1], [], []>} : vector<16x128xf32>, vector<128x128xf32>, vector<16x128xf32> -> vector<16x128xf32>
    %c0_5 = arith.constant 0 : index
    %c0_6 = arith.constant 0 : index
    %9 = vector.load %arg5[%c0_5, %c0_6] : memref<16x128xf32, #tpu.memory_space<vmem>>, vector<16x128xf32>
    tpu.vector_store %arg5[%c0_5, %c0_6], %8 {strides = array<i32>} : memref<16x128xf32, #tpu.memory_space<vmem>>, vector<16x128xf32>,
    %10 = vector.broadcast %1 : vector<16x1xi32> to vector<16x128xi32>
    %11 = arith.cmpi eq, %2, %10 : vector<16x128xi32>
    %cst_7 = arith.constant 0.000000e+00 : f32
    %12 = vector.broadcast %cst_7 : f32 to vector<16x128xf32>
    %13 = arith.select %11, %8, %12 : vector<16x128xi1>, vector<16x128xf32>
    %cst_8 = arith.constant dense<0.000000e+00> : vector<16xf32>
    %14 = vector.multi_reduction <add>, %13, %cst_8 [1] : vector<16x128xf32> to vector<16xf32>
    %15 = vector.shape_cast %14 : vector<16xf32> to vector<16x1xf32>
    %16 = vector.broadcast %0 : vector<16x1xi32> to vector<16x128xi32>
    %17 = arith.cmpi eq, %2, %16 : vector<16x128xi32>
    %c0_9 = arith.constant 0 : index
    %c0_10 = arith.constant 0 : index
    %18 = vector.load %arg4[%c0_9, %c0_10] : memref<1x128xf32, #tpu.memory_space<vmem>>, vector<1x128xf32>
    %cst_11 = arith.constant 0.000000e+00 : f32
    %19 = vector.shape_cast %18 : vector<1x128xf32> to vector<1x128xf32>
    %20 = vector.broadcast %19 : vector<1x128xf32> to vector<16x128xf32>
    %21 = vector.broadcast %cst_11 : f32 to vector<16x128xf32>
    %22 = arith.select %17, %20, %21 : vector<16x128xi1>, vector<16x128xf32>
    %cst_12 = arith.constant dense<0.000000e+00> : vector<16xf32>
    %23 = vector.multi_reduction <add>, %22, %cst_12 [1] : vector<16x128xf32> to vector<16xf32>
    %24 = vector.shape_cast %23 : vector<16xf32> to vector<16x1xf32>
    %25 = arith.subf %24, %15 : vector<16x1xf32>
    %c16_i32 = arith.constant 16 : i32
    %26 = arith.muli %arg0, %c16_i32 : i32
    %27 = tpu.iota {dimensions = array<i32: 0>} : vector<16x1xi32>
    %28 = vector.broadcast %26 : i32 to vector<16x1xi32>
    %29 = arith.addi %28, %27 : vector<16x1xi32>
    %c16_i32_13 = arith.constant 16 : i32
    %30 = vector.broadcast %c16_i32_13 : i32 to vector<16x1xi32>
    %31 = arith.cmpi slt, %29, %30 : vector<16x1xi32>
    %cst_14 = arith.constant 0.000000e+00 : f32
    %32 = vector.broadcast %cst_14 : f32 to vector<16x1xf32>
    %33 = arith.select %31, %25, %32 : vector<16x1xi1>, vector<16x1xf32>
    %c0_15 = arith.constant 0 : index
    %c0_16 = arith.constant 0 : index
    %34 = vector.load %arg6[%c0_15, %c0_16] : memref<16x1xf32, #tpu.memory_space<vmem>>, vector<16x1xf32>
    tpu.vector_store %arg6[%c0_15, %c0_16], %33 {strides = array<i32>} : memref<16x1xf32, #tpu.memory_space<vmem>>, vector<16x1xf32>,
    return
  }
  func.func @transform_0(%arg0: i32) -> (i32, i32) {
    %c0_i32 = arith.constant 0 : i32
    %c0_i32_0 = arith.constant 0 : i32
    return %arg0, %c0_i32 : i32, i32
  }
  func.func @transform_1(%arg0: i32) -> (i32, i32) {
    %c0_i32 = arith.constant 0 : i32
    %c0_i32_0 = arith.constant 0 : i32
    return %arg0, %c0_i32 : i32, i32
  }
  func.func @transform_2(%arg0: i32) -> (i32, i32) {
    %c0_i32 = arith.constant 0 : i32
    %c0_i32_0 = arith.constant 0 : i32
    %c0_i32_1 = arith.constant 0 : i32
    return %c0_i32, %c0_i32_0 : i32, i32
  }
  func.func @transform_3(%arg0: i32) -> (i32, i32) {
    %c0_i32 = arith.constant 0 : i32
    %c0_i32_0 = arith.constant 0 : i32
    %c0_i32_1 = arith.constant 0 : i32
    return %c0_i32, %c0_i32_0 : i32, i32
  }
  func.func @transform_4(%arg0: i32) -> (i32, i32) {
    %c0_i32 = arith.constant 0 : i32
    %c0_i32_0 = arith.constant 0 : i32
    return %arg0, %c0_i32 : i32, i32
  }
  func.func @transform_5(%arg0: i32) -> (i32, i32) {
    %c0_i32 = arith.constant 0 : i32
    %c0_i32_0 = arith.constant 0 : i32
    return %arg0, %c0_i32 : i32, i32
  }
}

</mosaic_0001>

<llo_original>
// kernel: _bigram_pallas_loss.1
$region0: #{_bigram_pallas_loss.1}
  #allocation0 [shape = 'u32[]', space=smem, size = 0x4, offset = 0x4, fixed_abs, tag = 'smem constant byte address 0x4 - core index']
  #allocation1 [shape = 'u32[144,128]{1,0:T(1,128)}', space=vmem, size = 0x12000, scoped, tag = 'internal scratch']
  %s0 = inlined_call_operand.vmem [shape: s32[16,1], index: 0, kind: input, shape index: {}]
  %s1 = inlined_call_operand.vmem [shape: s32[16,1], index: 1, kind: input, shape index: {}]
  %s2 = inlined_call_operand.vmem [shape: f32[128,128], index: 2, kind: input, shape index: {}]
  %s3 = inlined_call_operand.vmem [shape: f32[1,128], index: 3, kind: input, shape index: {}]
  %s4 = inlined_call_operand.hbm [shape: f32[16,128], index: 4, kind: output, shape index: {0}]
  %s5 = inlined_call_operand.vmem [shape: f32[16,1], index: 5, kind: output, shape index: {1}]
  %6 = xla_tuple %s4, %s5
  %s7 = sld [smem:[#allocation0]]
  $region34: #{_bigram_pallas_loss.1} parent=0
    _
  %s9 = ssub.s32 1, %s7
  %s10 = scalar_select 0, %s9, %s7
  $region1: #{_bigram_pallas_loss.1} parent=0
    #allocation2 [shape = 'u8[8192]{0}', space=vmem, size = 0x2000, scoped, tag = 'output window, operand 0, single buffered']
    #allocation3 [shape = 's32[1]{0}', space=sflag, size = 0x4, scoped, tag = 'scoped memory for _bigram_pallas_loss.1']
    %11 = vsyncpa [#allocation3], 0
    // Predicated region
    $region2: #{_bigram_pallas_loss.1} parent=1 // pred_check
      _
    $region3: #{_bigram_pallas_loss.1} parent=1 // pred_check_branch
      %13 = sbr.rel (0) target = $region5
    $region4: #{_bigram_pallas_loss.1} parent=1 // pred_region
      _
    $region5: #{_bigram_pallas_loss.1} parent=1 // pred_fallthru
      _
    // Predicated region
    $region6: #{_bigram_pallas_loss.1} parent=1 // pred_check
      _
    $region7: #{_bigram_pallas_loss.1} parent=1 // pred_check_branch
      %15 = sbr.rel (0) target = $region9
    $region8: #{_bigram_pallas_loss.1} parent=1 // pred_region
      _
    $region9: #{_bigram_pallas_loss.1} parent=1 // pred_fallthru
      _
    // Predicated region
    $region10: #{_bigram_pallas_loss.1} parent=1 // pred_check
      _
    $region11: #{_bigram_pallas_loss.1} parent=1 // pred_check_branch
      %17 = sbr.rel (0) target = $region13
    $region12: #{_bigram_pallas_loss.1} parent=1 // pred_region
      _
    $region13: #{_bigram_pallas_loss.1} parent=1 // pred_fallthru
      _
    // Predicated region
    $region14: #{_bigram_pallas_loss.1} parent=1 // pred_check
      _
    $region15: #{_bigram_pallas_loss.1} parent=1 // pred_check_branch
      %19 = sbr.rel (0) target = $region17
    $region16: #{_bigram_pallas_loss.1} parent=1 // pred_region
      _
    $region17: #{_bigram_pallas_loss.1} parent=1 // pred_fallthru
      _
    %v20 = vld [vmem:[%s0] sm:$0xff]
    %v21 = vld [vmem:[%s0 + $0x8] sm:$0xff]
    %v22 = vld [vmem:[%s1] sm:$0xff]
    %v23 = vld [vmem:[%s1 + $0x8] sm:$0xff]
    %v24 = vlaneseq
    %v25 = vand.u32 %v24, 127
    %26 = vset.pattern.permute.xlu0 0
    %27 = vperm.xlu0 %26, %v20
    %v28 = vpop.permute.xlu0 %27
    %29 = vset.pattern.permute.xlu0 0
    %30 = vperm.xlu0 %29, %v21
    %v31 = vpop.permute.xlu0 %30
    %vm32 = vcmp.eq.s32.totalorder %v25, %v28
    %vm33 = vcmp.eq.s32.totalorder %v25, %v31
    %v34 = vsel %vm32, 1, 0
    %v35 = vsel %vm33, 1, 0
    %v36 = vcvt.s32.f32 %v34
    %v37 = vcvt.s32.f32 %v35
    %v38 = vld [vmem:[%s2] sm:$0xff]
    %v39 = vld [vmem:[%s2 + $0x8] sm:$0xff]
    %v40 = vld [vmem:[%s2 + $0x10] sm:$0xff]
    %v41 = vld [vmem:[%s2 + $0x18] sm:$0xff]
    %v42 = vld [vmem:[%s2 + $0x20] sm:$0xff]
    %v43 = vld [vmem:[%s2 + $0x28] sm:$0xff]
    %v44 = vld [vmem:[%s2 + $0x30] sm:$0xff]
    %v45 = vld [vmem:[%s2 + $0x38] sm:$0xff]
    %v46 = vld [vmem:[%s2 + $0x40] sm:$0xff]
    %v47 = vld [vmem:[%s2 + $0x48] sm:$0xff]
    %v48 = vld [vmem:[%s2 + $0x50] sm:$0xff]
    %v49 = vld [vmem:[%s2 + $0x58] sm:$0xff]
    %v50 = vld [vmem:[%s2 + $0x60] sm:$0xff]
    %v51 = vld [vmem:[%s2 + $0x68] sm:$0xff]
    %v52 = vld [vmem:[%s2 + $0x70] sm:$0xff]
    %v53 = vld [vmem:[%s2 + $0x78] sm:$0xff]
    %54 = vmatprep.subr.mxu0 0.0
    %55 = vmatpush1.msra.mxu0 %v53
    %56 = vmatprep.subr.mxu0 0.0
    %57 = vmatpush1.msra.mxu0 %v52
    %58 = vmatprep.subr.mxu0 0.0
    %59 = vmatpush1.msra.mxu0 %v51
    %60 = vmatprep.subr.mxu0 0.0
    %61 = vmatpush1.msra.mxu0 %v50
    %62 = vmatprep.subr.mxu0 0.0
    %63 = vmatpush1.msra.mxu0 %v49
    %64 = vmatprep.subr.mxu0 0.0
    %65 = vmatpush1.msra.mxu0 %v48
    %66 = vmatprep.subr.mxu0 0.0
    %67 = vmatpush1.msra.mxu0 %v47
    %68 = vmatprep.subr.mxu0 0.0
    %69 = vmatpush1.msra.mxu0 %v46
    %70 = vmatprep.subr.mxu0 0.0
    %71 = vmatpush1.msra.mxu0 %v45
    %72 = vmatprep.subr.mxu0 0.0
    %73 = vmatpush1.msra.mxu0 %v44
    %74 = vmatprep.subr.mxu0 0.0
    %75 = vmatpush1.msra.mxu0 %v43
    %76 = vmatprep.subr.mxu0 0.0
    %77 = vmatpush1.msra.mxu0 %v42
    %78 = vmatprep.subr.mxu0 0.0
    %79 = vmatpush1.msra.mxu0 %v41
    %80 = vmatprep.subr.mxu0 0.0
    %81 = vmatpush1.msra.mxu0 %v40
    %82 = vmatprep.subr.mxu0 0.0
    %83 = vmatpush1.msra.mxu0 %v39
    %84 = vmatprep.subr.mxu0 0.0
    %85 = vmatpush1.msra.mxu0 %v38
    %86 = vmatprep.subr.mxu0 0.0
    %87 = vmatpush2.msra.mxu0 0.0
    %88 = vmatprep.subr.mxu0 0.0
    %89 = vmatpush2.msra.mxu0 0.0
    %90 = vmatprep.subr.mxu0 0.0
    %91 = vmatpush2.msra.mxu0 0.0
    %92 = vmatprep.subr.mxu0 0.0
    %93 = vmatpush2.msra.mxu0 0.0
    %94 = vmatprep.subr.mxu0 0.0
    %95 = vmatpush2.msra.mxu0 0.0
    %96 = vmatprep.subr.mxu0 0.0
    %97 = vmatpush2.msra.mxu0 0.0
    %98 = vmatprep.subr.mxu0 0.0
    %99 = vmatpush2.msra.mxu0 0.0
    %100 = vmatprep.subr.mxu0 0.0
    %101 = vmatpush2.msra.mxu0 0.0
    %102 = vmatprep.subr.mxu0 0.0
    %103 = vmatpush2.msra.mxu0 0.0
    %104 = vmatprep.subr.mxu0 0.0
    %105 = vmatpush2.msra.mxu0 0.0
    %106 = vmatprep.subr.mxu0 0.0
    %107 = vmatpush2.msra.mxu0 0.0
    %108 = vmatprep.subr.mxu0 0.0
    %109 = vmatpush2.msra.mxu0 0.0
    %110 = vmatprep.subr.mxu0 0.0
    %111 = vmatpush2.msra.mxu0 0.0
    %112 = vmatprep.subr.mxu0 0.0
    %113 = vmatpush2.msra.mxu0 0.0
    %114 = vmatprep.subr.mxu0 0.0
    %115 = vmatpush2.msra.mxu0 0.0
    %116 = vmatprep.subr.mxu0 0.0
    %117 = vmatpush2.msra.mxu0 0.0
    %118 = vmatprep.mubr.f32.mxu0 0.0
    %119 = vmatmul.mubr.f32.gmra.mxu0 %v36
    %v120 = vpop.f32.mrf.mxu0
    %v121 = vadd.f32 0.0, %v120
    %v122 = vpop.f32.mrf.mxu0
    %123 = vmatprep.mubr.f32.mxu0 0.0
    %124 = vmatmul.mubr.f32.gmra.mxu0 %v37
    %v125 = vpop.f32.mrf.mxu0
    %v126 = vadd.f32 0.0, %v125
    %v127 = vpop.f32.mrf.mxu0
    %128 = vdwg.mxu0
    %129 = vst [vmem:[#allocation2] sm:$0xff] %v121
    %130 = vst [vmem:[#allocation2 + $0x8] sm:$0xff] %v126
    %131 = vset.pattern.permute.xlu0 0
    %132 = vperm.xlu0 %131, %v22
    %v133 = vpop.permute.xlu0 %132
    %134 = vset.pattern.permute.xlu0 0
    %135 = vperm.xlu0 %134, %v23
    %v136 = vpop.permute.xlu0 %135
    %vm137 = vcmp.eq.s32.totalorder %v25, %v133
    %vm138 = vcmp.eq.s32.totalorder %v25, %v136
    %v139 = vsel %vm137, %v121, 0.0
    %v140 = vsel %vm138, %v126, 0.0
    %141 = vadd.xlane.f32.xlu0 %v139
    %v142 = vpop.xlane.xlu0 %141
    %143 = vadd.xlane.f32.xlu0 %v140
    %v144 = vpop.xlane.xlu0 %143
    %v145 = vld [vmem:[%s3] sm:$0x1]
    %v147 = vlaneseq
    %v148 = vshrl.u32 %v147, 7
    %v149 = vsub.s32 0, %v148
    %v150 = vrot.slane %v145, %v149
    %v152 = vsel %vm32, %v150, 0.0
    %v153 = vsel %vm33, %v150, 0.0
    %154 = vadd.xlane.f32.xlu0 %v152
    %v155 = vpop.xlane.xlu0 %154
    %156 = vadd.xlane.f32.xlu0 %v153
    %v157 = vpop.xlane.xlu0 %156
    %v158 = vsub.f32 %v155, %v142
    %v159 = vsub.f32 %v157, %v144
    %s160 = smul.u32 0, 16
    %v161 = vlaneseq
    %v162 = vshrl.u32 %v161, 7
    %v163 = vadd.s32 %v162, 8
    %v164 = vstv %s160
    %v165 = vadd.s32 %v164, %v162
    %v166 = vadd.s32 %v164, %v163
    %vm167 = vcmp.lt.s32.totalorder %v165, 16
    %vm168 = vcmp.lt.s32.totalorder %v166, 16
    %v169 = vsel %vm167, %v158, 0.0
    %v170 = vsel %vm168, %v159, 0.0
    %vm171 = vcmask 7168
    %172 = vst.msk [vmem:[%s5] sm:$0xff] %vm171, %v169
    %173 = vst.msk [vmem:[%s5 + $0x8] sm:$0xff] %vm171, %v170
    // Predicated region
    $region18: #{_bigram_pallas_loss.1} parent=1 // pred_check
      _
    $region19: #{_bigram_pallas_loss.1} parent=1 // pred_check_branch
      %175 = sbr.rel (0) target = $region21
    $region20: #{_bigram_pallas_loss.1} parent=1 // pred_region
      %s177 = ssub.s32 256, 256
      %178 = vsyncadd [#allocation3], %s177
      %s179 = sshll.u32 [#allocation2], 4
      %s180 = int_to_ptr.vmem [resolvable:$true] %s179
      %185 = dma.vmem_to_hbm [thread:$0]  %s180, 256, %s4, [#allocation3], 128, 128, 8
    $region21: #{_bigram_pallas_loss.1} parent=1 // pred_fallthru
      _
    // Predicated region
    $region22: #{_bigram_pallas_loss.1} parent=1 // pred_check
      _
    $region23: #{_bigram_pallas_loss.1} parent=1 // pred_check_branch
      %187 = sbr.rel (0) target = $region25
    $region24: #{_bigram_pallas_loss.1} parent=1 // pred_region
      _
    $region25: #{_bigram_pallas_loss.1} parent=1 // pred_fallthru
      _
    // Predicated region
    $region26: #{_bigram_pallas_loss.1} parent=1 // pred_check
      _
    $region27: #{_bigram_pallas_loss.1} parent=1 // pred_check_branch
      %189 = sbr.rel (0) target = $region29
    $region28: #{_bigram_pallas_loss.1} parent=1 // pred_region
      %190 = dma.done [#allocation3], 256
    $region29: #{_bigram_pallas_loss.1} parent=1 // pred_fallthru
      _
    // Predicated region
    $region30: #{_bigram_pallas_loss.1} parent=1 // pred_check
      _
    $region31: #{_bigram_pallas_loss.1} parent=1 // pred_check_branch
      %192 = sbr.rel (0) target = $region33
    $region32: #{_bigram_pallas_loss.1} parent=1 // pred_region
      _
    $region33: #{_bigram_pallas_loss.1} parent=1 // pred_fallthru
      _
    %193 = vsyncpa [#allocation3], 1

</llo_original>
